<compile_context>
chip_gen: v5e
topology: v5e:2x2
jax: 0.10.0
libtpu: 0.0.40
codegen_flags: <defaults>
</compile_context>

<pallas_src>
import jax
import jax.numpy as jnp
from jax.experimental import pallas as pl
from jax.experimental.pallas import tpu as pltpu

INPUT_SIZE = 22
HIDDEN = [128, 64, 32, 16]
OUT_SIZE = 2
DEFAULT_TB = 1024       # batch-tile rows per grid step (multiple of 8)


def _round_up(n, m):
    return ((n + m - 1) // m) * m


def ann_kernel(alpha_ref,                        # SMEM (4,)  PReLU alphas (scalar prefetch)
               x_ref,                            # VMEM (TB, 22)   current batch tile
               w1, b1, w2, b2, w3, b3, w4, b4,   # folded Linear+BN params (resident)
               w5, b5,                           # final Linear (16, 2)
               out_ref):                         # VMEM (TB, 2)    logits tile
    def prelu(h, a):
        return jnp.where(h >= 0.0, h, a * h)

    h = x_ref[...]
    h = prelu(jnp.dot(h, w1[...], preferred_element_type=jnp.float32) + b1[...],
              alpha_ref[0])
    h = prelu(jnp.dot(h, w2[...], preferred_element_type=jnp.float32) + b2[...],
              alpha_ref[1])
    h = prelu(jnp.dot(h, w3[...], preferred_element_type=jnp.float32) + b3[...],
              alpha_ref[2])
    h = prelu(jnp.dot(h, w4[...], preferred_element_type=jnp.float32) + b4[...],
              alpha_ref[3])
    out_ref[...] = (jnp.dot(h, w5[...], preferred_element_type=jnp.float32)
                    + b5[...])


def make_params(key):
    """Deterministic synthetic parameters mirroring the PyTorch module shapes."""
    dims = [INPUT_SIZE] + HIDDEN + [OUT_SIZE]
    params = {"linear": [], "bn": [], "alpha": []}
    for i in range(5):
        fan_in, fan_out = dims[i], dims[i + 1]
        key, kw, kb = jax.random.split(key, 3)
        bound = 1.0 / jnp.sqrt(fan_in)
        w = jax.random.uniform(kw, (fan_out, fan_in), jnp.float32, -bound, bound)
        b = jax.random.uniform(kb, (fan_out,), jnp.float32, -bound, bound)
        params["linear"].append((w, b))
        if i < 4:  # BatchNorm1d + PReLU follow the first 4 Linear layers
            key, kg, kbeta, km, kv = jax.random.split(key, 5)
            gamma = 1.0 + 0.1 * jax.random.normal(kg, (fan_out,), jnp.float32)
            beta = 0.1 * jax.random.normal(kbeta, (fan_out,), jnp.float32)
            r_mean = 0.1 * jax.random.normal(km, (fan_out,), jnp.float32)
            r_var = jnp.abs(1.0 + 0.1 * jax.random.normal(kv, (fan_out,),
                                                          jnp.float32))
            params["bn"].append((gamma, beta, r_mean, r_var))
            params["alpha"].append(jnp.float32(0.25))
    return params


def fold_linear_bn(w, b, gamma, beta, r_mean, r_var, eps=1e-5):
    """Fold BatchNorm1d (running stats) into the preceding Linear.

    y = ((x @ W.T + b) - mean) / sqrt(var + eps) * gamma + beta
      = x @ Wf + bf,  Wf = W.T * scale,  bf = (b - mean) * scale + beta
    """
    scale = gamma / jnp.sqrt(r_var + eps)
    wf = w.T * scale[None, :]               # (in, out)
    bf = (b - r_mean) * scale + beta        # (out,)
    return wf.astype(jnp.float32), bf.reshape(1, -1).astype(jnp.float32)


def ann_forward(x, params, *, tb=DEFAULT_TB):
    B = x.shape[0]
    x = x.astype(jnp.float32)

    # --- fold BN into the preceding Linears; transpose weights to (in, out) ---
    flat = []
    for i in range(4):
        w, b = params["linear"][i]
        gamma, beta, r_mean, r_var = params["bn"][i]
        wf, bf = fold_linear_bn(w, b, gamma, beta, r_mean, r_var)
        flat += [wf, bf]
    w5, b5 = params["linear"][4]
    flat += [w5.T.astype(jnp.float32),                       # (16, 2)
             b5.reshape(1, -1).astype(jnp.float32)]          # (1, 2)

    alphas = jnp.stack(params["alpha"]).astype(jnp.float32)  # (4,)

    # --- batch tiling: TB rows per grid step (multiple of 8, sublane aligned) ---
    TB = min(tb, _round_up(max(B, 1), 8))
    B_pad = _round_up(B, TB)
    if B_pad != B:
        x = jnp.pad(x, ((0, B_pad - B), (0, 0)))   # zero rows; sliced off below
    num_tiles = B_pad // TB

    # Constant index_maps keep the tiny weights resident across the whole grid
    # (DMA'd once; Pallas does not re-fetch blocks whose index is unchanged).
    def const_spec(arr):
        nd = arr.ndim
        return pl.BlockSpec(arr.shape, lambda i, *_: (0,) * nd)

    in_specs = [pl.BlockSpec((TB, INPUT_SIZE), lambda i, *_: (i, 0))]
    in_specs += [const_spec(a) for a in flat]
    out_specs = pl.BlockSpec((TB, OUT_SIZE), lambda i, *_: (i, 0))

    weight_bytes = sum(int(a.size) * 4 for a in flat)
    macs_per_row = (INPUT_SIZE * HIDDEN[0] + HIDDEN[0] * HIDDEN[1]
                    + HIDDEN[1] * HIDDEN[2] + HIDDEN[2] * HIDDEN[3]
                    + HIDDEN[3] * OUT_SIZE)
    cost = pl.CostEstimate(
        flops=2 * B_pad * macs_per_row,
        transcendentals=0,
        bytes_accessed=B_pad * (INPUT_SIZE + OUT_SIZE) * 4 + weight_bytes,
    )

    out = pl.pallas_call(
        ann_kernel,
        out_shape=jax.ShapeDtypeStruct((B_pad, OUT_SIZE), jnp.float32),
        grid_spec=pltpu.PrefetchScalarGridSpec(
            num_scalar_prefetch=1,
            grid=(num_tiles,),
            in_specs=in_specs,
            out_specs=out_specs,
        ),
        compiler_params=pltpu.CompilerParams(
            dimension_semantics=("parallel",),   # shards tiles across TCs on v7x
        ),
        cost_estimate=cost,
    )(alphas, x, *flat)

    return out[:B]


def reference_forward(x, params):
    """Pure-JAX reference of the eval-mode PyTorch forward (for sanity check)."""
    h = x.astype(jnp.float32)
    for i in range(4):
        w, b = params["linear"][i]
        gamma, beta, r_mean, r_var = params["bn"][i]
        h = h @ w.T + b
        h = (h - r_mean) / jnp.sqrt(r_var + 1e-5) * gamma + beta
        a = params["alpha"][i]
        h = jnp.where(h >= 0.0, h, a * h)
    w5, b5 = params["linear"][4]
    return h @ w5.T + b5


if __name__ == "__main__":
    key = jax.random.PRNGKey(0)
    key, kx1, kx2, kp = jax.random.split(key, 4)

    params = make_params(kp)

    # Case 1: small aligned batch.
    B1 = 8
    x1 = jax.random.normal(kx1, (B1, INPUT_SIZE), jnp.float32)
    out1 = jax.block_until_ready(ann_forward(x1, params))
    ref1 = reference_forward(x1, params)
    assert out1.shape == (B1, OUT_SIZE)
    assert jnp.allclose(out1, ref1, atol=1e-4, rtol=1e-4), "mismatch (B=8)"

    # Case 2: batch not a multiple of 8 (exercises the padded-tile path).
    B2 = 20
    x2 = jax.random.normal(kx2, (B2, INPUT_SIZE), jnp.float32)
    out2 = jax.block_until_ready(ann_forward(x2, params))
    ref2 = reference_forward(x2, params)
    assert out2.shape == (B2, OUT_SIZE)
    assert jnp.allclose(out2, ref2, atol=1e-4, rtol=1e-4), "mismatch (B=20)"

    print("KERNEL_OK")
</pallas_src>

<mosaic_0001>
module attributes {stable_mosaic.version = 11 : i64} {
  func.func @ann_kernel(%arg0: i32, %arg1: memref<4xf32, #tpu.memory_space<smem>>, %arg2: memref<8x22xf32, #tpu.memory_space<vmem>>, %arg3: memref<22x128xf32, #tpu.memory_space<vmem>>, %arg4: memref<1x128xf32, #tpu.memory_space<vmem>>, %arg5: memref<128x64xf32, #tpu.memory_space<vmem>>, %arg6: memref<1x64xf32, #tpu.memory_space<vmem>>, %arg7: memref<64x32xf32, #tpu.memory_space<vmem>>, %arg8: memref<1x32xf32, #tpu.memory_space<vmem>>, %arg9: memref<32x16xf32, #tpu.memory_space<vmem>>, %arg10: memref<1x16xf32, #tpu.memory_space<vmem>>, %arg11: memref<16x2xf32, #tpu.memory_space<vmem>>, %arg12: memref<1x2xf32, #tpu.memory_space<vmem>>, %arg13: memref<8x2xf32, #tpu.memory_space<vmem>>) attributes {dimension_semantics = [#tpu.dimension_semantics<parallel>], iteration_bounds = array<i64: 1>, scalar_prefetch = 1 : i64, scratch_operands = 0 : i64, tpu.core_type = #tpu.core_type<tc>, window_params = [{transform_indices = @transform_0, window_bounds = array<i64: 8, 22>}, {pipeline_mode = #tpu.pipeline_mode<synchronous>, transform_indices = @transform_1, window_bounds = array<i64: 22, 128>}, {pipeline_mode = #tpu.pipeline_mode<synchronous>, transform_indices = @transform_2, window_bounds = array<i64: 1, 128>}, {pipeline_mode = #tpu.pipeline_mode<synchronous>, transform_indices = @transform_3, window_bounds = array<i64: 128, 64>}, {pipeline_mode = #tpu.pipeline_mode<synchronous>, transform_indices = @transform_4, window_bounds = array<i64: 1, 64>}, {pipeline_mode = #tpu.pipeline_mode<synchronous>, transform_indices = @transform_5, window_bounds = array<i64: 64, 32>}, {pipeline_mode = #tpu.pipeline_mode<synchronous>, transform_indices = @transform_6, window_bounds = array<i64: 1, 32>}, {pipeline_mode = #tpu.pipeline_mode<synchronous>, transform_indices = @transform_7, window_bounds = array<i64: 32, 16>}, {pipeline_mode = #tpu.pipeline_mode<synchronous>, transform_indices = @transform_8, window_bounds = array<i64: 1, 16>}, {pipeline_mode = #tpu.pipeline_mode<synchronous>, transform_indices = @transform_9, window_bounds = array<i64: 16, 2>}, {pipeline_mode = #tpu.pipeline_mode<synchronous>, transform_indices = @transform_10, window_bounds = array<i64: 1, 2>}, {transform_indices = @transform_11, window_bounds = array<i64: 8, 2>}]} {
    %c0 = arith.constant 0 : index
    %c0_0 = arith.constant 0 : index
    %0 = vector.load %arg2[%c0, %c0_0] : memref<8x22xf32, #tpu.memory_space<vmem>>, vector<8x22xf32>
    %c0_1 = arith.constant 0 : index
    %c0_2 = arith.constant 0 : index
    %1 = vector.load %arg3[%c0_1, %c0_2] : memref<22x128xf32, #tpu.memory_space<vmem>>, vector<22x128xf32>
    %cst = arith.constant dense<0.000000e+00> : vector<8x128xf32>
    %2 = tpu.matmul %0, %1, %cst {dimension_numbers = #tpu.dot_dimension_numbers<[1], [0], [0], [1], [0, 0, 1, 1], [], []>} : vector<8x22xf32>, vector<22x128xf32>, vector<8x128xf32> -> vector<8x128xf32>
    %c0_3 = arith.constant 0 : index
    %c0_4 = arith.constant 0 : index
    %3 = vector.load %arg4[%c0_3, %c0_4] : memref<1x128xf32, #tpu.memory_space<vmem>>, vector<1x128xf32>
    %4 = vector.broadcast %3 : vector<1x128xf32> to vector<8x128xf32>
    %5 = arith.addf %2, %4 : vector<8x128xf32>
    %c0_5 = arith.constant 0 : index
    %6 = memref.load %arg1[%c0_5] : memref<4xf32, #tpu.memory_space<smem>>
    %cst_6 = arith.constant 0.000000e+00 : f32
    %7 = vector.broadcast %cst_6 : f32 to vector<8x128xf32>
    %8 = arith.cmpf oge, %5, %7 : vector<8x128xf32>
    %9 = vector.broadcast %6 : f32 to vector<8x128xf32>
    %10 = arith.mulf %9, %5 : vector<8x128xf32>
    %11 = arith.select %8, %5, %10 : vector<8x128xi1>, vector<8x128xf32>
    %c0_7 = arith.constant 0 : index
    %c0_8 = arith.constant 0 : index
    %12 = vector.load %arg5[%c0_7, %c0_8] : memref<128x64xf32, #tpu.memory_space<vmem>>, vector<128x64xf32>
    %cst_9 = arith.constant dense<0.000000e+00> : vector<8x64xf32>
    %13 = tpu.matmul %11, %12, %cst_9 {dimension_numbers = #tpu.dot_dimension_numbers<[1], [0], [0], [1], [0, 0, 1, 1], [], []>} : vector<8x128xf32>, vector<128x64xf32>, vector<8x64xf32> -> vector<8x64xf32>
    %c0_10 = arith.constant 0 : index
    %c0_11 = arith.constant 0 : index
    %14 = vector.load %arg6[%c0_10, %c0_11] : memref<1x64xf32, #tpu.memory_space<vmem>>, vector<1x64xf32>
    %15 = vector.broadcast %14 : vector<1x64xf32> to vector<8x64xf32>
    %16 = arith.addf %13, %15 : vector<8x64xf32>
    %c1 = arith.constant 1 : index
    %17 = memref.load %arg1[%c1] : memref<4xf32, #tpu.memory_space<smem>>
    %cst_12 = arith.constant 0.000000e+00 : f32
    %18 = vector.broadcast %cst_12 : f32 to vector<8x64xf32>
    %19 = arith.cmpf oge, %16, %18 : vector<8x64xf32>
    %20 = vector.broadcast %17 : f32 to vector<8x64xf32>
    %21 = arith.mulf %20, %16 : vector<8x64xf32>
    %22 = arith.select %19, %16, %21 : vector<8x64xi1>, vector<8x64xf32>
    %c0_13 = arith.constant 0 : index
    %c0_14 = arith.constant 0 : index
    %23 = vector.load %arg7[%c0_13, %c0_14] : memref<64x32xf32, #tpu.memory_space<vmem>>, vector<64x32xf32>
    %cst_15 = arith.constant dense<0.000000e+00> : vector<8x32xf32>
    %24 = tpu.matmul %22, %23, %cst_15 {dimension_numbers = #tpu.dot_dimension_numbers<[1], [0], [0], [1], [0, 0, 1, 1], [], []>} : vector<8x64xf32>, vector<64x32xf32>, vector<8x32xf32> -> vector<8x32xf32>
    %c0_16 = arith.constant 0 : index
    %c0_17 = arith.constant 0 : index
    %25 = vector.load %arg8[%c0_16, %c0_17] : memref<1x32xf32, #tpu.memory_space<vmem>>, vector<1x32xf32>
    %26 = vector.broadcast %25 : vector<1x32xf32> to vector<8x32xf32>
    %27 = arith.addf %24, %26 : vector<8x32xf32>
    %c2 = arith.constant 2 : index
    %28 = memref.load %arg1[%c2] : memref<4xf32, #tpu.memory_space<smem>>
    %cst_18 = arith.constant 0.000000e+00 : f32
    %29 = vector.broadcast %cst_18 : f32 to vector<8x32xf32>
    %30 = arith.cmpf oge, %27, %29 : vector<8x32xf32>
    %31 = vector.broadcast %28 : f32 to vector<8x32xf32>
    %32 = arith.mulf %31, %27 : vector<8x32xf32>
    %33 = arith.select %30, %27, %32 : vector<8x32xi1>, vector<8x32xf32>
    %c0_19 = arith.constant 0 : index
    %c0_20 = arith.constant 0 : index
    %34 = vector.load %arg9[%c0_19, %c0_20] : memref<32x16xf32, #tpu.memory_space<vmem>>, vector<32x16xf32>
    %cst_21 = arith.constant dense<0.000000e+00> : vector<8x16xf32>
    %35 = tpu.matmul %33, %34, %cst_21 {dimension_numbers = #tpu.dot_dimension_numbers<[1], [0], [0], [1], [0, 0, 1, 1], [], []>} : vector<8x32xf32>, vector<32x16xf32>, vector<8x16xf32> -> vector<8x16xf32>
    %c0_22 = arith.constant 0 : index
    %c0_23 = arith.constant 0 : index
    %36 = vector.load %arg10[%c0_22, %c0_23] : memref<1x16xf32, #tpu.memory_space<vmem>>, vector<1x16xf32>
    %37 = vector.broadcast %36 : vector<1x16xf32> to vector<8x16xf32>
    %38 = arith.addf %35, %37 : vector<8x16xf32>
    %c3 = arith.constant 3 : index
    %39 = memref.load %arg1[%c3] : memref<4xf32, #tpu.memory_space<smem>>
    %cst_24 = arith.constant 0.000000e+00 : f32
    %40 = vector.broadcast %cst_24 : f32 to vector<8x16xf32>
    %41 = arith.cmpf oge, %38, %40 : vector<8x16xf32>
    %42 = vector.broadcast %39 : f32 to vector<8x16xf32>
    %43 = arith.mulf %42, %38 : vector<8x16xf32>
    %44 = arith.select %41, %38, %43 : vector<8x16xi1>, vector<8x16xf32>
    %c0_25 = arith.constant 0 : index
    %c0_26 = arith.constant 0 : index
    %45 = vector.load %arg11[%c0_25, %c0_26] : memref<16x2xf32, #tpu.memory_space<vmem>>, vector<16x2xf32>
    %cst_27 = arith.constant dense<0.000000e+00> : vector<8x2xf32>
    %46 = tpu.matmul %44, %45, %cst_27 {dimension_numbers = #tpu.dot_dimension_numbers<[1], [0], [0], [1], [0, 0, 1, 1], [], []>} : vector<8x16xf32>, vector<16x2xf32>, vector<8x2xf32> -> vector<8x2xf32>
    %c0_28 = arith.constant 0 : index
    %c0_29 = arith.constant 0 : index
    %47 = vector.load %arg12[%c0_28, %c0_29] : memref<1x2xf32, #tpu.memory_space<vmem>>, vector<1x2xf32>
    %48 = vector.broadcast %47 : vector<1x2xf32> to vector<8x2xf32>
    %49 = arith.addf %46, %48 : vector<8x2xf32>
    %c0_30 = arith.constant 0 : index
    %c0_31 = arith.constant 0 : index
    %50 = vector.load %arg13[%c0_30, %c0_31] : memref<8x2xf32, #tpu.memory_space<vmem>>, vector<8x2xf32>
    tpu.vector_store %arg13[%c0_30, %c0_31], %49 {strides = array<i32>} : memref<8x2xf32, #tpu.memory_space<vmem>>, vector<8x2xf32>,
    return
  }
  func.func @transform_0(%arg0: i32, %arg1: memref<4xf32, #tpu.memory_space<smem>>) -> (i32, i32) {
    %c0_i32 = arith.constant 0 : i32
    %c0_i32_0 = arith.constant 0 : i32
    return %arg0, %c0_i32 : i32, i32
  }
  func.func @transform_1(%arg0: i32, %arg1: memref<4xf32, #tpu.memory_space<smem>>) -> (i32, i32) {
    %c0_i32 = arith.constant 0 : i32
    %c0_i32_0 = arith.constant 0 : i32
    %c0_i32_1 = arith.constant 0 : i32
    return %c0_i32, %c0_i32_0 : i32, i32
  }
  func.func @transform_2(%arg0: i32, %arg1: memref<4xf32, #tpu.memory_space<smem>>) -> (i32, i32) {
    %c0_i32 = arith.constant 0 : i32
    %c0_i32_0 = arith.constant 0 : i32
    %c0_i32_1 = arith.constant 0 : i32
    return %c0_i32, %c0_i32_0 : i32, i32
  }
  func.func @transform_3(%arg0: i32, %arg1: memref<4xf32, #tpu.memory_space<smem>>) -> (i32, i32) {
    %c0_i32 = arith.constant 0 : i32
    %c0_i32_0 = arith.constant 0 : i32
    %c0_i32_1 = arith.constant 0 : i32
    return %c0_i32, %c0_i32_0 : i32, i32
  }
  func.func @transform_4(%arg0: i32, %arg1: memref<4xf32, #tpu.memory_space<smem>>) -> (i32, i32) {
    %c0_i32 = arith.constant 0 : i32
    %c0_i32_0 = arith.constant 0 : i32
    %c0_i32_1 = arith.constant 0 : i32
    return %c0_i32, %c0_i32_0 : i32, i32
  }
  func.func @transform_5(%arg0: i32, %arg1: memref<4xf32, #tpu.memory_space<smem>>) -> (i32, i32) {
    %c0_i32 = arith.constant 0 : i32
    %c0_i32_0 = arith.constant 0 : i32
    %c0_i32_1 = arith.constant 0 : i32
    return %c0_i32, %c0_i32_0 : i32, i32
  }
  func.func @transform_6(%arg0: i32, %arg1: memref<4xf32, #tpu.memory_space<smem>>) -> (i32, i32) {
    %c0_i32 = arith.constant 0 : i32
    %c0_i32_0 = arith.constant 0 : i32
    %c0_i32_1 = arith.constant 0 : i32
    return %c0_i32, %c0_i32_0 : i32, i32
  }
  func.func @transform_7(%arg0: i32, %arg1: memref<4xf32, #tpu.memory_space<smem>>) -> (i32, i32) {
    %c0_i32 = arith.constant 0 : i32
    %c0_i32_0 = arith.constant 0 : i32
    %c0_i32_1 = arith.constant 0 : i32
    return %c0_i32, %c0_i32_0 : i32, i32
  }
  func.func @transform_8(%arg0: i32, %arg1: memref<4xf32, #tpu.memory_space<smem>>) -> (i32, i32) {
    %c0_i32 = arith.constant 0 : i32
    %c0_i32_0 = arith.constant 0 : i32
    %c0_i32_1 = arith.constant 0 : i32
    return %c0_i32, %c0_i32_0 : i32, i32
  }
  func.func @transform_9(%arg0: i32, %arg1: memref<4xf32, #tpu.memory_space<smem>>) -> (i32, i32) {
    %c0_i32 = arith.constant 0 : i32
    %c0_i32_0 = arith.constant 0 : i32
    %c0_i32_1 = arith.constant 0 : i32
    return %c0_i32, %c0_i32_0 : i32, i32
  }
  func.func @transform_10(%arg0: i32, %arg1: memref<4xf32, #tpu.memory_space<smem>>) -> (i32, i32) {
    %c0_i32 = arith.constant 0 : i32
    %c0_i32_0 = arith.constant 0 : i32
    %c0_i32_1 = arith.constant 0 : i32
    return %c0_i32, %c0_i32_0 : i32, i32
  }
  func.func @transform_11(%arg0: i32, %arg1: memref<4xf32, #tpu.memory_space<smem>>) -> (i32, i32) {
    %c0_i32 = arith.constant 0 : i32
    %c0_i32_0 = arith.constant 0 : i32
    return %arg0, %c0_i32 : i32, i32
  }
}

</mosaic_0001>

<llo_original>
// kernel: tpu_custom_call.1
$region0: #{tpu_custom_call.1}
  #allocation0 [shape = 'u32[]', space=smem, size = 0x4, offset = 0x4, fixed_abs, tag = 'smem constant byte address 0x4 - core index']
  #allocation1 [shape = 'u32[72,128]{1,0:T(1,128)}', space=vmem, size = 0x9000, scoped, tag = 'internal scratch']
  #allocation2 [shape = 's32[1]{0}', space=sflag, size = 0x4, scoped, tag = 'scoped memory for tpu_custom_call.1']
  #allocation3 [shape = 'u8[512]{0}', space=smem, size = 0x200, scoped, tag = 'prefetched SMEM operand 0']
  %s0 = inlined_call_operand.vmem [shape: f32[4], index: 0, kind: input, shape index: {}]
  %s1 = inlined_call_operand.vmem [shape: f32[8,22], index: 1, kind: input, shape index: {}]
  %s2 = inlined_call_operand.vmem [shape: f32[22,128], index: 2, kind: input, shape index: {}]
  %s3 = inlined_call_operand.vmem [shape: f32[1,128], index: 3, kind: input, shape index: {}]
  %s4 = inlined_call_operand.vmem [shape: f32[128,64], index: 4, kind: input, shape index: {}]
  %s5 = inlined_call_operand.vmem [shape: f32[1,64], index: 5, kind: input, shape index: {}]
  %s6 = inlined_call_operand.vmem [shape: f32[64,32], index: 6, kind: input, shape index: {}]
  %s7 = inlined_call_operand.vmem [shape: f32[1,32], index: 7, kind: input, shape index: {}]
  %s8 = inlined_call_operand.vmem [shape: f32[32,16], index: 8, kind: input, shape index: {}]
  %s9 = inlined_call_operand.vmem [shape: f32[1,16], index: 9, kind: input, shape index: {}]
  %s10 = inlined_call_operand.vmem [shape: f32[16,2], index: 10, kind: input, shape index: {}]
  %s11 = inlined_call_operand.vmem [shape: f32[1,2], index: 11, kind: input, shape index: {}]
  %s12 = inlined_call_operand.vmem [shape: f32[8,2], index: 12, kind: output, shape index: {}]
  %s13 = sld [smem:[#allocation0]]
  $region54: #{tpu_custom_call.1} parent=0
    _
  %s15 = ssub.s32 1, %s13
  %s16 = scalar_select 0, %s15, %s13
  %s18 = sshll.u32 %s0, 4
  %s19 = int_to_ptr.vmem [resolvable:$true] %s18
  %21 = dma.vmem_to_smem %s19, 16, [#allocation3], [#allocation2]
  %23 = dma.done [#allocation2], 16
  %24 = sfence
  // Predicated region
  $region2: #{tpu_custom_call.1} parent=0 // pred_check
    _
  $region3: #{tpu_custom_call.1} parent=0 // pred_check_branch
    %26 = sbr.rel (0) target = $region5
  $region4: #{tpu_custom_call.1} parent=0 // pred_region
    _
  $region5: #{tpu_custom_call.1} parent=0 // pred_fallthru
    _
  // Predicated region
  $region6: #{tpu_custom_call.1} parent=0 // pred_check
    _
  $region7: #{tpu_custom_call.1} parent=0 // pred_check_branch
    %28 = sbr.rel (0) target = $region9
  $region8: #{tpu_custom_call.1} parent=0 // pred_region
    _
  $region9: #{tpu_custom_call.1} parent=0 // pred_fallthru
    _
  // Predicated region
  $region10: #{tpu_custom_call.1} parent=0 // pred_check
    _
  $region11: #{tpu_custom_call.1} parent=0 // pred_check_branch
    %30 = sbr.rel (0) target = $region13
  $region12: #{tpu_custom_call.1} parent=0 // pred_region
    _
  $region13: #{tpu_custom_call.1} parent=0 // pred_fallthru
    _
  // Predicated region
  $region14: #{tpu_custom_call.1} parent=0 // pred_check
    _
  $region15: #{tpu_custom_call.1} parent=0 // pred_check_branch
    %32 = sbr.rel (0) target = $region17
  $region16: #{tpu_custom_call.1} parent=0 // pred_region
    _
  $region17: #{tpu_custom_call.1} parent=0 // pred_fallthru
    _
  // Predicated region
  $region18: #{tpu_custom_call.1} parent=0 // pred_check
    _
  $region19: #{tpu_custom_call.1} parent=0 // pred_check_branch
    %34 = sbr.rel (0) target = $region21
  $region20: #{tpu_custom_call.1} parent=0 // pred_region
    _
  $region21: #{tpu_custom_call.1} parent=0 // pred_fallthru
    _
  // Predicated region
  $region22: #{tpu_custom_call.1} parent=0 // pred_check
    _
  $region23: #{tpu_custom_call.1} parent=0 // pred_check_branch
    %36 = sbr.rel (0) target = $region25
  $region24: #{tpu_custom_call.1} parent=0 // pred_region
    _
  $region25: #{tpu_custom_call.1} parent=0 // pred_fallthru
    _
  // Predicated region
  $region26: #{tpu_custom_call.1} parent=0 // pred_check
    _
  $region27: #{tpu_custom_call.1} parent=0 // pred_check_branch
    %38 = sbr.rel (0) target = $region29
  $region28: #{tpu_custom_call.1} parent=0 // pred_region
    _
  $region29: #{tpu_custom_call.1} parent=0 // pred_fallthru
    _
  // Predicated region
  $region30: #{tpu_custom_call.1} parent=0 // pred_check
    _
  $region31: #{tpu_custom_call.1} parent=0 // pred_check_branch
    %40 = sbr.rel (0) target = $region33
  $region32: #{tpu_custom_call.1} parent=0 // pred_region
    _
  $region33: #{tpu_custom_call.1} parent=0 // pred_fallthru
    _
  // Predicated region
  $region34: #{tpu_custom_call.1} parent=0 // pred_check
    _
  $region35: #{tpu_custom_call.1} parent=0 // pred_check_branch
    %42 = sbr.rel (0) target = $region37
  $region36: #{tpu_custom_call.1} parent=0 // pred_region
    _
  $region37: #{tpu_custom_call.1} parent=0 // pred_fallthru
    _
  // Predicated region
  $region38: #{tpu_custom_call.1} parent=0 // pred_check
    _
  $region39: #{tpu_custom_call.1} parent=0 // pred_check_branch
    %44 = sbr.rel (0) target = $region41
  $region40: #{tpu_custom_call.1} parent=0 // pred_region
    _
  $region41: #{tpu_custom_call.1} parent=0 // pred_fallthru
    _
  // Predicated region
  $region42: #{tpu_custom_call.1} parent=0 // pred_check
    _
  $region43: #{tpu_custom_call.1} parent=0 // pred_check_branch
    %46 = sbr.rel (0) target = $region45
  $region44: #{tpu_custom_call.1} parent=0 // pred_region
    _
  $region45: #{tpu_custom_call.1} parent=0 // pred_fallthru
    _
  %v47 = vld [vmem:[%s1] sm:$0xff]
  %v48 = vld [vmem:[%s2] sm:$0xff]
  %v49 = vld [vmem:[%s2 + $0x8] sm:$0xff]
  %v50 = vld [vmem:[%s2 + $0x10] sm:$0x3f]
  %v51 = vld [vmem:[%s3] sm:$0x1]
  %v53 = vperm.slane %v51, 0
  %vm55 = vcmask 179200
  %v57 = vsel %vm55, %v47, 0
  %vm59 = vcmask 1045504
  %v61 = vsel %vm59, %v50, 0
  %63 = vmatpush.msra.mxu0 0.0
  %64 = vmatpush.msra.mxu0 0.0
  %65 = vmatpush.msra.mxu0 0.0
  %66 = vmatpush.msra.mxu0 0.0
  %67 = vmatpush.msra.mxu0 0.0
  %68 = vmatpush.msra.mxu0 0.0
  %69 = vmatpush.msra.mxu0 0.0
  %70 = vmatpush.msra.mxu0 0.0
  %71 = vmatpush.msra.mxu0 0.0
  %72 = vmatpush.msra.mxu0 0.0
  %73 = vmatpush.msra.mxu0 0.0
  %74 = vmatpush.msra.mxu0 0.0
  %75 = vmatpush.msra.mxu0 0.0
  %76 = vmatpush.msra.mxu0 %v61
  %77 = vmatpush.msra.mxu0 %v49
  %78 = vmatpush.msra.mxu0 %v48
  %79 = vmatmul.f32.gmra.mxu0 %v57
  %v80 = vpop.f32.mrf.mxu0
  %v81 = vadd.f32 %v53, %v80
  %82 = vdwg.mxu0
  %s83 = sld [smem:[#allocation3]]
  %vm84 = vcmp.ge.f32.partialorder %v81, 0.0
  %v85 = vstv %s83
  %v86 = vmul.f32 %v85, %v81
  %v87 = vsel %vm84, %v81, %v86
  %v88 = vld [vmem:[%s4] sm:$0xff]
  %v89 = vld [vmem:[%s4 + $0x8] sm:$0xff]
  %v90 = vld [vmem:[%s4 + $0x10] sm:$0xff]
  %v91 = vld [vmem:[%s4 + $0x18] sm:$0xff]
  %v92 = vld [vmem:[%s4 + $0x20] sm:$0xff]
  %v93 = vld [vmem:[%s4 + $0x28] sm:$0xff]
  %v94 = vld [vmem:[%s4 + $0x30] sm:$0xff]
  %v95 = vld [vmem:[%s4 + $0x38] sm:$0xff]
  %v96 = vld [vmem:[%s4 + $0x40] sm:$0xff]
  %v97 = vld [vmem:[%s4 + $0x48] sm:$0xff]
  %v98 = vld [vmem:[%s4 + $0x50] sm:$0xff]
  %v99 = vld [vmem:[%s4 + $0x58] sm:$0xff]
  %v100 = vld [vmem:[%s4 + $0x60] sm:$0xff]
  %v101 = vld [vmem:[%s4 + $0x68] sm:$0xff]
  %v102 = vld [vmem:[%s4 + $0x70] sm:$0xff]
  %v103 = vld [vmem:[%s4 + $0x78] sm:$0xff]
  %v104 = vld [vmem:[%s5] sm:$0x1]
  %v106 = vperm.slane %v104, 0
  %108 = vmatpush.msra.mxu0 %v103
  %109 = vmatpush.msra.mxu0 %v102
  %110 = vmatpush.msra.mxu0 %v101
  %111 = vmatpush.msra.mxu0 %v100
  %112 = vmatpush.msra.mxu0 %v99
  %113 = vmatpush.msra.mxu0 %v98
  %114 = vmatpush.msra.mxu0 %v97
  %115 = vmatpush.msra.mxu0 %v96
  %116 = vmatpush.msra.mxu0 %v95
  %117 = vmatpush.msra.mxu0 %v94
  %118 = vmatpush.msra.mxu0 %v93
  %119 = vmatpush.msra.mxu0 %v92
  %120 = vmatpush.msra.mxu0 %v91
  %121 = vmatpush.msra.mxu0 %v90
  %122 = vmatpush.msra.mxu0 %v89
  %123 = vmatpush.msra.mxu0 %v88
  %124 = vmatmul.f32.gmra.mxu0 %v87
  %v125 = vpop.f32.mrf.mxu0
  %v126 = vadd.f32 %v106, %v125
  %127 = vdwg.mxu0
  %s128 = sld [smem:[#allocation3 + $0x1]]
  %vm129 = vcmp.ge.f32.partialorder %v126, 0.0
  %v130 = vstv %s128
  %v131 = vmul.f32 %v130, %v126
  %v132 = vsel %vm129, %v126, %v131
  %v133 = vld [vmem:[%s6] sm:$0xff]
  %v134 = vld [vmem:[%s6 + $0x8] sm:$0xff]
  %v135 = vld [vmem:[%s6 + $0x10] sm:$0xff]
  %v136 = vld [vmem:[%s6 + $0x18] sm:$0xff]
  %v137 = vld [vmem:[%s6 + $0x20] sm:$0xff]
  %v138 = vld [vmem:[%s6 + $0x28] sm:$0xff]
  %v139 = vld [vmem:[%s6 + $0x30] sm:$0xff]
  %v140 = vld [vmem:[%s6 + $0x38] sm:$0xff]
  %v141 = vld [vmem:[%s7] sm:$0x1]
  %v143 = vperm.slane %v141, 0
  %vm145 = vcmask 523264
  %v147 = vsel %vm145, %v132, 0
  %149 = vmatpush.msra.mxu0 0.0
  %150 = vmatpush.msra.mxu0 0.0
  %151 = vmatpush.msra.mxu0 0.0
  %152 = vmatpush.msra.mxu0 0.0
  %153 = vmatpush.msra.mxu0 0.0
  %154 = vmatpush.msra.mxu0 0.0
  %155 = vmatpush.msra.mxu0 0.0
  %156 = vmatpush.msra.mxu0 0.0
  %157 = vmatpush.msra.mxu0 %v140
  %158 = vmatpush.msra.mxu0 %v139
  %159 = vmatpush.msra.mxu0 %v138
  %160 = vmatpush.msra.mxu0 %v137
  %161 = vmatpush.msra.mxu0 %v136
  %162 = vmatpush.msra.mxu0 %v135
  %163 = vmatpush.msra.mxu0 %v134
  %164 = vmatpush.msra.mxu0 %v133
  %165 = vmatmul.f32.gmra.mxu0 %v147
  %v166 = vpop.f32.mrf.mxu0
  %v167 = vadd.f32 %v143, %v166
  %168 = vdwg.mxu0
  %s169 = sld [smem:[#allocation3 + $0x2]]
  %vm170 = vcmp.ge.f32.partialorder %v167, 0.0
  %v171 = vstv %s169
  %v172 = vmul.f32 %v171, %v167
  %v173 = vsel %vm170, %v167, %v172
  %v174 = vld [vmem:[%s8] sm:$0xff]
  %v175 = vld [vmem:[%s8 + $0x8] sm:$0xff]
  %v176 = vld [vmem:[%s8 + $0x10] sm:$0xff]
  %v177 = vld [vmem:[%s8 + $0x18] sm:$0xff]
  %v178 = vld [vmem:[%s9] sm:$0x1]
  %v180 = vperm.slane %v178, 0
  %vm182 = vcmask 261120
  %v184 = vsel %vm182, %v173, 0
  %186 = vmatpush.msra.mxu0 0.0
  %187 = vmatpush.msra.mxu0 0.0
  %188 = vmatpush.msra.mxu0 0.0
  %189 = vmatpush.msra.mxu0 0.0
  %190 = vmatpush.msra.mxu0 0.0
  %191 = vmatpush.msra.mxu0 0.0
  %192 = vmatpush.msra.mxu0 0.0
  %193 = vmatpush.msra.mxu0 0.0
  %194 = vmatpush.msra.mxu0 0.0
  %195 = vmatpush.msra.mxu0 0.0
  %196 = vmatpush.msra.mxu0 0.0
  %197 = vmatpush.msra.mxu0 0.0
  %198 = vmatpush.msra.mxu0 %v177
  %199 = vmatpush.msra.mxu0 %v176
  %200 = vmatpush.msra.mxu0 %v175
  %201 = vmatpush.msra.mxu0 %v174
  %202 = vmatmul.f32.gmra.mxu0 %v184
  %v203 = vpop.f32.mrf.mxu0
  %v204 = vadd.f32 %v180, %v203
  %205 = vdwg.mxu0
  %s206 = sld [smem:[#allocation3 + $0x3]]
  %vm207 = vcmp.ge.f32.partialorder %v204, 0.0
  %v208 = vstv %s206
  %v209 = vmul.f32 %v208, %v204
  %v210 = vsel %vm207, %v204, %v209
  %v211 = vld [vmem:[%s10] sm:$0xff]
  %v212 = vld [vmem:[%s10 + $0x8] sm:$0xff]
  %v213 = vld [vmem:[%s11] sm:$0x1]
  %v215 = vperm.slane %v213, 0
  %vm217 = vcmask 130048
  %v219 = vsel %vm217, %v210, 0
  %221 = vmatpush.msra.mxu0 0.0
  %222 = vmatpush.msra.mxu0 0.0
  %223 = vmatpush.msra.mxu0 0.0
  %224 = vmatpush.msra.mxu0 0.0
  %225 = vmatpush.msra.mxu0 0.0
  %226 = vmatpush.msra.mxu0 0.0
  %227 = vmatpush.msra.mxu0 0.0
  %228 = vmatpush.msra.mxu0 0.0
  %229 = vmatpush.msra.mxu0 0.0
  %230 = vmatpush.msra.mxu0 0.0
  %231 = vmatpush.msra.mxu0 0.0
  %232 = vmatpush.msra.mxu0 0.0
  %233 = vmatpush.msra.mxu0 0.0
  %234 = vmatpush.msra.mxu0 0.0
  %235 = vmatpush.msra.mxu0 %v212
  %236 = vmatpush.msra.mxu0 %v211
  %237 = vmatmul.f32.gmra.mxu0 %v219
  %v238 = vpop.f32.mrf.mxu0
  %v239 = vadd.f32 %v215, %v238
  %240 = vdwg.mxu0
  %vm241 = vcmask 15360
  %242 = vst.msk [vmem:[%s12] sm:$0xff] %vm241, %v239
  // Predicated region
  $region46: #{tpu_custom_call.1} parent=0 // pred_check
    _
  $region47: #{tpu_custom_call.1} parent=0 // pred_check_branch
    %244 = sbr.rel (0) target = $region49
  $region48: #{tpu_custom_call.1} parent=0 // pred_region
    _
  $region49: #{tpu_custom_call.1} parent=0 // pred_fallthru
    _
  // Predicated region
  $region50: #{tpu_custom_call.1} parent=0 // pred_check
    _
  $region51: #{tpu_custom_call.1} parent=0 // pred_check_branch
    %246 = sbr.rel (0) target = $region53
  $region52: #{tpu_custom_call.1} parent=0 // pred_region
    _
  $region53: #{tpu_custom_call.1} parent=0 // pred_fallthru
    _

</llo_original>
